<compile_context>
chip_gen: v7x
topology: tpu7x:2x2x1
jax: 0.10.0
libtpu: 0.0.40
codegen_flags: <defaults>
</compile_context>

<pallas_src>
import functools

import numpy as np
import jax
import jax.numpy as jnp
from jax import lax
from jax.experimental import pallas as pl
from jax.experimental.pallas import tpu as pltpu

_PAD_LABEL = -(2 ** 31)   # sentinel for padded rows (real labels must differ from it)
_BIG = 1e30


def _round_up(x, m):
    return ((x + m - 1) // m) * m


# ---------------------------------------------------------------------------
# Stage 1: per-sample centroids + ||cent_j||^2 row, tiled over row tiles.
# ---------------------------------------------------------------------------
def _stage1_centroids_kernel(lab_col_ref, lab_row_ref, emb_mm_ref,
                             cent_ref, csq_ref, *, matmul_dtype, count_col):
    mm = matmul_dtype
    same = lab_col_ref[...] == lab_row_ref[...]                         # (TM, Np)
    one = jnp.ones((), mm)
    zero = jnp.zeros((), mm)
    same_mm = jnp.where(same, one, zero)                                # exact 0/1

    # Per-sample class sum on the MXU: (TM,Np) @ (Np,Dp) -> f32 accumulate.
    raw = jnp.dot(same_mm, emb_mm_ref[...],
                  preferred_element_type=jnp.float32)                   # (TM, Dp)

    if count_col is not None:
        # Class counts come for free out of the ones-column of emb (exact:
        # 0/1 * 1.0 in bf16 is exact, accumulation is f32).
        counts = raw[:, count_col:count_col + 1]                        # (TM, 1)
    else:
        counts = jnp.sum(jnp.where(same, jnp.float32(1.0), jnp.float32(0.0)),
                         axis=1, keepdims=True)                         # (TM, 1)

    cent = raw * pl.reciprocal(counts)                                  # (TM, Dp) f32
    cent_ref[...] = cent

    # ||cent_j||^2 for this tile's rows, emitted lane-dense as a (1, TM) row via a
    # tiny ones-row MXU contraction (avoids an XLU reduce + relayout).
    cent2_mm = (cent * cent).astype(mm)
    ones_row = jnp.ones((1, cent.shape[1]), mm)
    csq_ref[...] = lax.dot_general(ones_row, cent2_mm,
                                   (((1,), (1,)), ((), ())),
                                   preferred_element_type=jnp.float32)  # (1, TM)


# ---------------------------------------------------------------------------
# Stage 2: ap / an / hinge per row, tiled over row tiles.
# ---------------------------------------------------------------------------
def _stage2_loss_kernel(lab_col_ref, lab_row_ref, emb_ref, cent_own_ref,
                        cent_all_ref, csq_ref, loss_ref, *, margin, matmul_dtype):
    mm = matmul_dtype
    emb = emb_ref[...]                                                  # (TM, Dp) f32
    lab_col = lab_col_ref[...]                                          # (TM, 1)
    lab_row = lab_row_ref[...]                                          # (1, Np)

    # ap: distance to own centroid, direct difference, f32 end to end.
    diff = emb - cent_own_ref[...]
    ap = jnp.sqrt(jnp.sum(diff * diff, axis=1, keepdims=True))          # (TM, 1)

    # an: min squared distance to a different-class (valid) centroid; sqrt deferred
    # to the (TM,1) min result (monotone, so min commutes with sqrt).
    emb_mm = emb.astype(mm)                    # single cast, reused for the MXU dot
    cross = lax.dot_general(emb_mm, cent_all_ref[...],
                            (((1,), (1,)), ((), ())),
                            preferred_element_type=jnp.float32)         # (TM, Np)

    big = jnp.float32(_BIG)
    valid_row = lab_row != _PAD_LABEL
    # Fold both the 0.5 factor and the padded-column exclusion into the (1,Np) row,
    # keeping the (TM,Np) plane to a single subtract + select.
    half_csq = jnp.where(valid_row, 0.5 * csq_ref[...], big)            # (1, Np)
    same = lab_col == lab_row                                           # (TM, Np)
    neg_part = jnp.where(same, big, half_csq - cross)                   # (TM, Np)

    emb_sq = jnp.sum(emb * emb, axis=1, keepdims=True)                  # (TM, 1)
    an2 = emb_sq + 2.0 * jnp.min(neg_part, axis=1, keepdims=True)       # (TM, 1)
    an = jnp.sqrt(jnp.maximum(an2, 0.0))

    losses = jnp.maximum(ap - an + margin, 0.0)
    valid_col = lab_col != _PAD_LABEL
    loss_ref[...] = jnp.where(valid_col, losses, 0.0)


# ---------------------------------------------------------------------------
# Wrapper
# ---------------------------------------------------------------------------
def _vmem_estimate(npad, dp, tm, mm_size):
    resident = 2 * npad * dp * mm_size          # double-buffered resident block
    tiles = 10 * tm * dp * 4                    # emb/cent tiles (x2 bufs) + f32/mm temps
    planes = 6 * tm * npad * 4                  # (TM, Np) temporaries (cross, neg_part, ...)
    rows = 8 * 8 * npad * 4 + 8 * tm * 128 * 4  # (1,Np)/(Np,1) buffers, sublane/lane padded
    return resident + tiles + planes + rows + (2 << 20)


def centroid_triplet_loss(embeddings, labels, margin=0.3,
                          matmul_dtype=jnp.bfloat16):
    """embeddings: (N, D) float; labels: (N,) int. Returns scalar float32 loss.

    matmul_dtype: dtype of the MXU operands only (elementwise math and ap stay f32).
    Use jnp.float32 for an exact path, jnp.bfloat16 (default) for speed.
    """
    n, d = embeddings.shape
    assert n >= 2, "need at least two samples (and >= 2 distinct labels)"
    mm = jnp.dtype(matmul_dtype)
    mm_size = mm.itemsize

    # Lane-dense padding of D; if there is a spare pad column, use it for the
    # ones-column counts trick (free), otherwise fall back to an in-kernel row-sum.
    dp = max(128, _round_up(d, 128))
    count_col = d if dp > d else None

    # Generation-aware VMEM budget (~0.8x physical per-core capacity).
    try:
        vmem_cap = int(pltpu.get_tpu_info().vmem_capacity_bytes)
    except Exception:
        vmem_cap = 64 << 20
    budget = min(max(int(0.8 * vmem_cap), 32 << 20), 112 << 20)

    # Row-tile size: single tile for small batches, else 256 (128 if VMEM-tight).
    npad0 = _round_up(n, 8)
    if npad0 <= 256:
        tm = npad0
    else:
        tm = 256
        if _vmem_estimate(_round_up(n, 256), dp, 256, mm_size) > budget:
            tm = 128
    npad = _round_up(n, tm)
    ntiles = npad // tm

    emb = embeddings.astype(jnp.float32)
    emb = jnp.pad(emb, ((0, npad - n), (0, dp - d)))
    if count_col is not None:
        # 1.0 for ALL rows (incl. padded) so every class count is >= 1.
        emb = emb.at[:, count_col].set(1.0)

    lab = jnp.pad(labels.astype(jnp.int32), (0, npad - n),
                  constant_values=_PAD_LABEL)
    lab_col = lab.reshape(npad, 1)
    lab_row = lab.reshape(1, npad)

    emb_mm = emb if mm == jnp.dtype(jnp.float32) else emb.astype(mm)

    vmem_limit = int(min(max(_vmem_estimate(npad, dp, tm, mm_size), 32 << 20),
                         budget))
    cparams = pltpu.CompilerParams(dimension_semantics=("parallel",),
                                   vmem_limit_bytes=vmem_limit)

    # ---- Stage 1: centroids (N,Dp) f32 + ||cent||^2 row (1,N) f32 ----
    cent, csq = pl.pallas_call(
        functools.partial(_stage1_centroids_kernel,
                          matmul_dtype=mm, count_col=count_col),
        grid=(ntiles,),
        in_specs=[
            pl.BlockSpec((tm, 1), lambda i: (i, 0)),        # labels, column tile
            pl.BlockSpec((1, npad), lambda i: (0, 0)),      # labels, row (resident)
            pl.BlockSpec((npad, dp), lambda i: (0, 0)),     # emb (mm dtype, resident)
        ],
        out_specs=(
            pl.BlockSpec((tm, dp), lambda i: (i, 0)),       # centroid rows
            pl.BlockSpec((1, tm), lambda i: (0, i)),        # ||cent||^2 row
        ),
        out_shape=(
            jax.ShapeDtypeStruct((npad, dp), jnp.float32),
            jax.ShapeDtypeStruct((1, npad), jnp.float32),
        ),
        compiler_params=cparams,
    )(lab_col, lab_row, emb_mm)

    cent_mm = cent if mm == jnp.dtype(jnp.float32) else cent.astype(mm)

    # ---- Stage 2: per-row hinge losses, row-tiled / megacore-parallel ----
    per_row = pl.pallas_call(
        functools.partial(_stage2_loss_kernel,
                          margin=float(margin), matmul_dtype=mm),
        grid=(ntiles,),
        in_specs=[
            pl.BlockSpec((tm, 1), lambda i: (i, 0)),        # labels, column tile
            pl.BlockSpec((1, npad), lambda i: (0, 0)),      # labels, row (resident)
            pl.BlockSpec((tm, dp), lambda i: (i, 0)),       # emb tile (f32, pipelined)
            pl.BlockSpec((tm, dp), lambda i: (i, 0)),       # own-centroid tile (f32)
            pl.BlockSpec((npad, dp), lambda i: (0, 0)),     # all centroids (mm, resident)
            pl.BlockSpec((1, npad), lambda i: (0, 0)),      # ||cent||^2 row (resident)
        ],
        out_specs=pl.BlockSpec((tm, 1), lambda i: (i, 0)),
        out_shape=jax.ShapeDtypeStruct((npad, 1), jnp.float32),
        compiler_params=cparams,
    )(lab_col, lab_row, emb, cent, cent_mm, csq)

    # Tiny epilogue reduce (padded rows already zeroed in-kernel).
    return jnp.sum(per_row) / jnp.float32(n)


# ---------------------------------------------------------------------------
# numpy mirror of the PyTorch forward (verification only)
# ---------------------------------------------------------------------------
def _reference_loss(emb, labels, margin):
    uniq = np.unique(labels)
    cents = np.stack([emb[labels == l].mean(axis=0) for l in uniq])
    ap, an = [], []
    for i in range(emb.shape[0]):
        l = labels[i]
        c = cents[uniq == l][0]
        ap.append(np.linalg.norm(emb[i] - c))
        neg = cents[uniq != l]
        an.append(np.min(np.linalg.norm(neg - emb[i], axis=1)))
    losses = np.maximum(np.asarray(ap) - np.asarray(an) + margin, 0.0)
    return float(losses.mean())


if __name__ == "__main__":
    key = jax.random.PRNGKey(0)
    k1, k2, k3, k4 = jax.random.split(key, 4)

    # Case 1: N multiple of 8, D not multiple of 128 (ones-column counts path).
    emb1 = jax.random.normal(k1, (8, 32), dtype=jnp.float32)
    lab1 = jnp.array([0, 0, 1, 1, 2, 2, 3, 3], dtype=jnp.int32)
    ref1 = _reference_loss(np.asarray(emb1), np.asarray(lab1), 0.3)
    out = jax.block_until_ready(
        centroid_triplet_loss(emb1, lab1, 0.3, matmul_dtype=jnp.float32))
    assert abs(float(out) - ref1) < 1e-4, (float(out), ref1)
    out = jax.block_until_ready(centroid_triplet_loss(emb1, lab1, 0.3))  # bf16 MXU
    assert abs(float(out) - ref1) < 2e-2 * max(1.0, abs(ref1)), (float(out), ref1)

    # Case 2: N- and D-padding / masking path (N=6 -> 8, D=40 -> 128).
    emb2 = jax.random.normal(k2, (6, 40), dtype=jnp.float32)
    lab2 = jnp.array([0, 0, 1, 1, 2, 2], dtype=jnp.int32)
    ref2 = _reference_loss(np.asarray(emb2), np.asarray(lab2), 0.3)
    out = jax.block_until_ready(
        centroid_triplet_loss(emb2, lab2, 0.3, matmul_dtype=jnp.float32))
    assert abs(float(out) - ref2) < 1e-4, (float(out), ref2)

    # Case 3: D multiple of 128 -> in-kernel row-sum counts fallback.
    emb3 = jax.random.normal(k3, (10, 128), dtype=jnp.float32)
    lab3 = jnp.array([0, 0, 0, 1, 1, 2, 2, 3, 3, 3], dtype=jnp.int32)
    ref3 = _reference_loss(np.asarray(emb3), np.asarray(lab3), 0.3)
    out = jax.block_until_ready(
        centroid_triplet_loss(emb3, lab3, 0.3, matmul_dtype=jnp.float32))
    assert abs(float(out) - ref3) < 1e-4, (float(out), ref3)

    # Case 4: multi-tile grid path (N=300 -> TM=256, 2 row tiles, padded rows).
    emb4 = jax.random.normal(k4, (300, 64), dtype=jnp.float32)
    lab4 = jnp.arange(300, dtype=jnp.int32) % 37
    ref4 = _reference_loss(np.asarray(emb4), np.asarray(lab4), 6.0)
    out = jax.block_until_ready(
        centroid_triplet_loss(emb4, lab4, 6.0, matmul_dtype=jnp.float32))
    assert abs(float(out) - ref4) < 5e-4, (float(out), ref4)

    print("KERNEL_OK")
</pallas_src>

<mosaic_0001>
module attributes {stable_mosaic.version = 11 : i64} {
  func.func @_stage1_centroids_kernel(%arg0: i32, %arg1: memref<8x1xi32, #tpu.memory_space<vmem>>, %arg2: memref<1x8xi32, #tpu.memory_space<vmem>>, %arg3: memref<8x128xf32, #tpu.memory_space<vmem>>, %arg4: memref<8x128xf32, #tpu.memory_space<vmem>>, %arg5: memref<1x8xf32, #tpu.memory_space<vmem>>) attributes {dimension_semantics = [#tpu.dimension_semantics<parallel>], iteration_bounds = array<i64: 1>, scalar_prefetch = 0 : i64, scratch_operands = 0 : i64, tpu.core_type = #tpu.core_type<tc>, window_params = [{transform_indices = @transform_0, window_bounds = array<i64: 8, 1>}, {pipeline_mode = #tpu.pipeline_mode<synchronous>, transform_indices = @transform_1, window_bounds = array<i64: 1, 8>}, {pipeline_mode = #tpu.pipeline_mode<synchronous>, transform_indices = @transform_2, window_bounds = array<i64: 8, 128>}, {transform_indices = @transform_3, window_bounds = array<i64: 8, 128>}, {transform_indices = @transform_4, window_bounds = array<i64: 1, 8>}]} {
    %c0 = arith.constant 0 : index
    %c0_0 = arith.constant 0 : index
    %0 = vector.load %arg1[%c0, %c0_0] : memref<8x1xi32, #tpu.memory_space<vmem>>, vector<8x1xi32>
    %c0_1 = arith.constant 0 : index
    %c0_2 = arith.constant 0 : index
    %1 = vector.load %arg2[%c0_1, %c0_2] : memref<1x8xi32, #tpu.memory_space<vmem>>, vector<1x8xi32>
    %2 = vector.broadcast %0 : vector<8x1xi32> to vector<8x8xi32>
    %3 = vector.broadcast %1 : vector<1x8xi32> to vector<8x8xi32>
    %4 = arith.cmpi eq, %2, %3 : vector<8x8xi32>
    %cst = arith.constant 1.000000e+00 : f32
    %cst_3 = arith.constant 0.000000e+00 : f32
    %5 = vector.broadcast %cst : f32 to vector<8x8xf32>
    %6 = vector.broadcast %cst_3 : f32 to vector<8x8xf32>
    %7 = arith.select %4, %5, %6 : vector<8x8xi1>, vector<8x8xf32>
    %c0_4 = arith.constant 0 : index
    %c0_5 = arith.constant 0 : index
    %8 = vector.load %arg3[%c0_4, %c0_5] : memref<8x128xf32, #tpu.memory_space<vmem>>, vector<8x128xf32>
    %cst_6 = arith.constant dense<0.000000e+00> : vector<8x128xf32>
    %9 = tpu.matmul %7, %8, %cst_6 {dimension_numbers = #tpu.dot_dimension_numbers<[1], [0], [0], [1], [0, 0, 1, 1], [], []>} : vector<8x8xf32>, vector<8x128xf32>, vector<8x128xf32> -> vector<8x128xf32>
    %10 = vector.extract_strided_slice %9 {offsets = [0, 32], sizes = [8, 1], strides = [1, 1]} : vector<8x128xf32> to vector<8x1xf32>
    %11 = tpu.reciprocal %10 : vector<8x1xf32> -> vector<8x1xf32>
    %12 = vector.broadcast %11 : vector<8x1xf32> to vector<8x128xf32>
    %13 = arith.mulf %9, %12 : vector<8x128xf32>
    %c0_7 = arith.constant 0 : index
    %c0_8 = arith.constant 0 : index
    %14 = vector.load %arg4[%c0_7, %c0_8] : memref<8x128xf32, #tpu.memory_space<vmem>>, vector<8x128xf32>
    tpu.vector_store %arg4[%c0_7, %c0_8], %13 {strides = array<i32>} : memref<8x128xf32, #tpu.memory_space<vmem>>, vector<8x128xf32>,
    %15 = arith.mulf %13, %13 : vector<8x128xf32>
    %cst_9 = arith.constant 1.000000e+00 : f32
    %16 = vector.broadcast %cst_9 : f32 to vector<1x128xf32>
    %cst_10 = arith.constant dense<0.000000e+00> : vector<1x8xf32>
    %17 = tpu.matmul %16, %15, %cst_10 {dimension_numbers = #tpu.dot_dimension_numbers<[1], [1], [0], [0], [0, 0, 1, 0], [], []>} : vector<1x128xf32>, vector<8x128xf32>, vector<1x8xf32> -> vector<1x8xf32>
    %c0_11 = arith.constant 0 : index
    %c0_12 = arith.constant 0 : index
    %18 = vector.load %arg5[%c0_11, %c0_12] : memref<1x8xf32, #tpu.memory_space<vmem>>, vector<1x8xf32>
    tpu.vector_store %arg5[%c0_11, %c0_12], %17 {strides = array<i32>} : memref<1x8xf32, #tpu.memory_space<vmem>>, vector<1x8xf32>,
    return
  }
  func.func @transform_0(%arg0: i32) -> (i32, i32) {
    %c0_i32 = arith.constant 0 : i32
    %c0_i32_0 = arith.constant 0 : i32
    return %arg0, %c0_i32 : i32, i32
  }
  func.func @transform_1(%arg0: i32) -> (i32, i32) {
    %c0_i32 = arith.constant 0 : i32
    %c0_i32_0 = arith.constant 0 : i32
    %c0_i32_1 = arith.constant 0 : i32
    return %c0_i32, %c0_i32_0 : i32, i32
  }
  func.func @transform_2(%arg0: i32) -> (i32, i32) {
    %c0_i32 = arith.constant 0 : i32
    %c0_i32_0 = arith.constant 0 : i32
    %c0_i32_1 = arith.constant 0 : i32
    return %c0_i32, %c0_i32_0 : i32, i32
  }
  func.func @transform_3(%arg0: i32) -> (i32, i32) {
    %c0_i32 = arith.constant 0 : i32
    %c0_i32_0 = arith.constant 0 : i32
    return %arg0, %c0_i32 : i32, i32
  }
  func.func @transform_4(%arg0: i32) -> (i32, i32) {
    %c0_i32 = arith.constant 0 : i32
    %c0_i32_0 = arith.constant 0 : i32
    return %c0_i32, %arg0 : i32, i32
  }
}

</mosaic_0001>

<llo_original>
// kernel: tpu_custom_call.1
$region0: #{tpu_custom_call.1}
  #allocation0 [shape = 'u32[]', space=smem, size = 0x4, offset = 0x4, fixed_abs, tag = 'smem constant byte address 0x4 - core index']
  #allocation1 [shape = 'u32[144,128]{1,0:T(1,128)}', space=vmem, size = 0x12000, scoped, tag = 'internal scratch']
  %s0 = inlined_call_operand.vmem [shape: s32[8,1], index: 0, kind: input, shape index: {}]
  %s1 = inlined_call_operand.vmem [shape: s32[1,8], index: 1, kind: input, shape index: {}]
  %s2 = inlined_call_operand.vmem [shape: f32[8,128], index: 2, kind: input, shape index: {}]
  %s3 = inlined_call_operand.hbm [shape: f32[8,128], index: 3, kind: output, shape index: {0}]
  %s4 = inlined_call_operand.hbm [shape: f32[1,8], index: 4, kind: output, shape index: {1}]
  %5 = xla_tuple %s3, %s4
  %s6 = sld [smem:[#allocation0]]
  $region30: #{tpu_custom_call.1} parent=0
    _
  %s8 = ssub.s32 1, %s6
  %s9 = scalar_select 0, %s8, %s6
  $region1: #{tpu_custom_call.1} parent=0
    #allocation2 [shape = 'u8[4096]{0}', space=vmem, size = 0x1000, scoped, tag = 'output window, operand 0, single buffered']
    #allocation3 [shape = 's32[1]{0}', space=sflag, size = 0x4, scoped, tag = 'scoped memory for tpu_custom_call.1']
    #allocation4 [shape = 'u8[512]{0}', space=vmem, size = 0x400, scoped, tag = 'output window, operand 1, single buffered']
    #allocation5 [shape = 's32[1]{0}', space=sflag, size = 0x4, scoped, tag = 'scoped memory for tpu_custom_call.1']
    %10 = vsyncpa [#allocation3], 0
    %11 = vsyncpa [#allocation5], 0
    // Predicated region
    $region2: #{tpu_custom_call.1} parent=1 // pred_check
      _
    $region3: #{tpu_custom_call.1} parent=1 // pred_check_branch
      %13 = sbr.rel (0) target = $region5
    $region4: #{tpu_custom_call.1} parent=1 // pred_region
      _
    $region5: #{tpu_custom_call.1} parent=1 // pred_fallthru
      _
    // Predicated region
    $region6: #{tpu_custom_call.1} parent=1 // pred_check
      _
    $region7: #{tpu_custom_call.1} parent=1 // pred_check_branch
      %15 = sbr.rel (0) target = $region9
    $region8: #{tpu_custom_call.1} parent=1 // pred_region
      _
    $region9: #{tpu_custom_call.1} parent=1 // pred_fallthru
      _
    // Predicated region
    $region10: #{tpu_custom_call.1} parent=1 // pred_check
      _
    $region11: #{tpu_custom_call.1} parent=1 // pred_check_branch
      %17 = sbr.rel (0) target = $region13
    $region12: #{tpu_custom_call.1} parent=1 // pred_region
      _
    $region13: #{tpu_custom_call.1} parent=1 // pred_fallthru
      _
    %v18 = vld [vmem:[%s0] sm:$0xff]
    %v19 = vld [vmem:[%s1] sm:$0x1]
    %20 = vset.pattern.permute.xlu0 0
    %21 = vperm.xlu0 %20, %v18
    %v22 = vpop.permute.xlu0 %21
    %v23 = vlaneseq
    %v24 = vshrl.u32 %v23, 7
    %v25 = vsub.s32 0, %v24
    %v26 = vrot.slane %v19, %v25
    %vm27 = vcmp.eq.s32.totalorder %v22, %v26
    %v28 = vsel %vm27, 1.0, 0.0
    %v29 = vld [vmem:[%s2] sm:$0xff]
    %vm30 = vcmask 64512
    %v32 = vsel %vm30, %v28, 0
    %34 = vmatprep.subr.mxu0 0.0
    %35 = vmatpush1.msra.mxu0 %v29
    %36 = vmatprep.subr.mxu0 0.0
    %37 = vmatpush1.msra.mxu0 0.0
    %38 = vmatprep.subr.mxu0 0.0
    %39 = vmatpush1.msra.mxu0 0.0
    %40 = vmatprep.subr.mxu0 0.0
    %41 = vmatpush1.msra.mxu0 0.0
    %42 = vmatprep.subr.mxu0 0.0
    %43 = vmatpush1.msra.mxu0 0.0
    %44 = vmatprep.subr.mxu0 0.0
    %45 = vmatpush1.msra.mxu0 0.0
    %46 = vmatprep.subr.mxu0 0.0
    %47 = vmatpush1.msra.mxu0 0.0
    %48 = vmatprep.subr.mxu0 0.0
    %49 = vmatpush1.msra.mxu0 0.0
    %50 = vmatprep.subr.mxu0 0.0
    %51 = vmatpush1.msra.mxu0 0.0
    %52 = vmatprep.subr.mxu0 0.0
    %53 = vmatpush1.msra.mxu0 0.0
    %54 = vmatprep.subr.mxu0 0.0
    %55 = vmatpush1.msra.mxu0 0.0
    %56 = vmatprep.subr.mxu0 0.0
    %57 = vmatpush1.msra.mxu0 0.0
    %58 = vmatprep.subr.mxu0 0.0
    %59 = vmatpush1.msra.mxu0 0.0
    %60 = vmatprep.subr.mxu0 0.0
    %61 = vmatpush1.msra.mxu0 0.0
    %62 = vmatprep.subr.mxu0 0.0
    %63 = vmatpush1.msra.mxu0 0.0
    %64 = vmatprep.subr.mxu0 0.0
    %65 = vmatpush1.msra.mxu0 0.0
    %66 = vmatprep.subr.mxu0 0.0
    %67 = vmatpush1.msra.mxu0 0.0
    %68 = vmatprep.subr.mxu0 0.0
    %69 = vmatpush1.msra.mxu0 0.0
    %70 = vmatprep.subr.mxu0 0.0
    %71 = vmatpush1.msra.mxu0 0.0
    %72 = vmatprep.subr.mxu0 0.0
    %73 = vmatpush1.msra.mxu0 0.0
    %74 = vmatprep.subr.mxu0 0.0
    %75 = vmatpush1.msra.mxu0 0.0
    %76 = vmatprep.subr.mxu0 0.0
    %77 = vmatpush1.msra.mxu0 0.0
    %78 = vmatprep.subr.mxu0 0.0
    %79 = vmatpush1.msra.mxu0 0.0
    %80 = vmatprep.subr.mxu0 0.0
    %81 = vmatpush1.msra.mxu0 0.0
    %82 = vmatprep.subr.mxu0 0.0
    %83 = vmatpush1.msra.mxu0 0.0
    %84 = vmatprep.subr.mxu0 0.0
    %85 = vmatpush1.msra.mxu0 0.0
    %86 = vmatprep.subr.mxu0 0.0
    %87 = vmatpush1.msra.mxu0 0.0
    %88 = vmatprep.subr.mxu0 0.0
    %89 = vmatpush1.msra.mxu0 0.0
    %90 = vmatprep.subr.mxu0 0.0
    %91 = vmatpush1.msra.mxu0 0.0
    %92 = vmatprep.subr.mxu0 0.0
    %93 = vmatpush1.msra.mxu0 0.0
    %94 = vmatprep.subr.mxu0 0.0
    %95 = vmatpush1.msra.mxu0 0.0
    %96 = vmatprep.subr.mxu0 0.0
    %97 = vmatpush1.msra.mxu0 0.0
    %98 = vmatprep.mubr.f32.mxu0 0.0
    %99 = vmatmul.mubr.f32.gmra.mrb[0].mxu0 %v32
    %v100 = vpop.f32.mrb[0].mxu0
    %v101 = vadd.f32 0.0, %v100
    %v102 = vpop.f32.mrb[0].mxu0
    %103 = vdwg.mxu0
    %v104 = vrcp.pop %v101
    %106 = vset.pattern.permute.xlu0 32
    %107 = vperm.xlu0 %106, %v104
    %v108 = vpop.permute.xlu0 %107
    %v110 = vmul.f32 %v101, %v108
    %111 = vst [vmem:[#allocation2] sm:$0xff] %v110
    %v112 = vmul.f32 %v110, %v110
    %113 = vmatprep.subr.mxu0 0.0
    %114 = vmatpush1.xpose.msra.mxu0 %v112
    %115 = vmatprep.subr.mxu0 0.0
    %116 = vmatpush1.xpose.msra.mxu0 0.0
    %117 = vmatprep.subr.mxu0 0.0
    %118 = vmatpush1.xpose.msra.mxu0 0.0
    %119 = vmatprep.subr.mxu0 0.0
    %120 = vmatpush1.xpose.msra.mxu0 0.0
    %121 = vmatprep.subr.mxu0 0.0
    %122 = vmatpush1.xpose.msra.mxu0 0.0
    %123 = vmatprep.subr.mxu0 0.0
    %124 = vmatpush1.xpose.msra.mxu0 0.0
    %125 = vmatprep.subr.mxu0 0.0
    %126 = vmatpush1.xpose.msra.mxu0 0.0
    %127 = vmatprep.subr.mxu0 0.0
    %128 = vmatpush1.xpose.msra.mxu0 0.0
    %129 = vmatprep.subr.mxu0 0.0
    %130 = vmatpush1.xpose.msra.mxu0 0.0
    %131 = vmatprep.subr.mxu0 0.0
    %132 = vmatpush1.xpose.msra.mxu0 0.0
    %133 = vmatprep.subr.mxu0 0.0
    %134 = vmatpush1.xpose.msra.mxu0 0.0
    %135 = vmatprep.subr.mxu0 0.0
    %136 = vmatpush1.xpose.msra.mxu0 0.0
    %137 = vmatprep.subr.mxu0 0.0
    %138 = vmatpush1.xpose.msra.mxu0 0.0
    %139 = vmatprep.subr.mxu0 0.0
    %140 = vmatpush1.xpose.msra.mxu0 0.0
    %141 = vmatprep.subr.mxu0 0.0
    %142 = vmatpush1.xpose.msra.mxu0 0.0
    %143 = vmatprep.subr.mxu0 0.0
    %144 = vmatpush1.xpose.msra.mxu0 0.0
    %145 = vmatprep.subr.mxu0 0.0
    %146 = vmatpush1.xpose.msra.mxu0 0.0
    %147 = vmatprep.subr.mxu0 0.0
    %148 = vmatpush1.xpose.msra.mxu0 0.0
    %149 = vmatprep.subr.mxu0 0.0
    %150 = vmatpush1.xpose.msra.mxu0 0.0
    %151 = vmatprep.subr.mxu0 0.0
    %152 = vmatpush1.xpose.msra.mxu0 0.0
    %153 = vmatprep.subr.mxu0 0.0
    %154 = vmatpush1.xpose.msra.mxu0 0.0
    %155 = vmatprep.subr.mxu0 0.0
    %156 = vmatpush1.xpose.msra.mxu0 0.0
    %157 = vmatprep.subr.mxu0 0.0
    %158 = vmatpush1.xpose.msra.mxu0 0.0
    %159 = vmatprep.subr.mxu0 0.0
    %160 = vmatpush1.xpose.msra.mxu0 0.0
    %161 = vmatprep.subr.mxu0 0.0
    %162 = vmatpush1.xpose.msra.mxu0 0.0
    %163 = vmatprep.subr.mxu0 0.0
    %164 = vmatpush1.xpose.msra.mxu0 0.0
    %165 = vmatprep.subr.mxu0 0.0
    %166 = vmatpush1.xpose.msra.mxu0 0.0
    %167 = vmatprep.subr.mxu0 0.0
    %168 = vmatpush1.xpose.msra.mxu0 0.0
    %169 = vmatprep.subr.mxu0 0.0
    %170 = vmatpush1.xpose.msra.mxu0 0.0
    %171 = vmatprep.subr.mxu0 0.0
    %172 = vmatpush1.xpose.msra.mxu0 0.0
    %173 = vmatprep.subr.mxu0 0.0
    %174 = vmatpush1.xpose.msra.mxu0 0.0
    %175 = vmatprep.subr.mxu0 0.0
    %176 = vmatpush1.xpose.msra.mxu0 0.0
    %177 = vmatprep.mubr.f32.mxu0 0.0
    %178 = vmatmul.mubr.f32.gmra.mrb[0].mxu0 1.0
    %v179 = vpop.f32.mrb[0].mxu0
    %v180 = vadd.f32 0.0, %v179
    %v181 = vpop.f32.mrb[0].mxu0
    %182 = vdwg.mxu0
    %vm183 = vcmask 57344
    %184 = vst.msk [vmem:[#allocation4] sm:$0x1] %vm183, %v180
    // Predicated region
    $region14: #{tpu_custom_call.1} parent=1 // pred_check
      _
    $region15: #{tpu_custom_call.1} parent=1 // pred_check_branch
      %186 = sbr.rel (0) target = $region17
    $region16: #{tpu_custom_call.1} parent=1 // pred_region
      %s188 = ssub.s32 128, 128
      %189 = vsyncadd [#allocation3], %s188
      %s191 = sshll.u32 [#allocation2], 4
      %s192 = int_to_ptr.vmem [resolvable:$true] %s191
      %194 = dma.vmem_to_hbm [thread:$0]  %s192, 128, %s3, [#allocation3]
    $region17: #{tpu_custom_call.1} parent=1 // pred_fallthru
      _
    // Predicated region
    $region18: #{tpu_custom_call.1} parent=1 // pred_check
      _
    $region19: #{tpu_custom_call.1} parent=1 // pred_check_branch
      %196 = sbr.rel (0) target = $region21
    $region20: #{tpu_custom_call.1} parent=1 // pred_region
      %s198 = ssub.s32 16, 16
      %199 = vsyncadd [#allocation5], %s198
      %s201 = sshll.u32 [#allocation4], 4
      %s202 = int_to_ptr.vmem [resolvable:$true] %s201
      %204 = dma.vmem_to_hbm [thread:$0]  %s202, 16, %s4, [#allocation5]
    $region21: #{tpu_custom_call.1} parent=1 // pred_fallthru
      _
    // Predicated region
    $region22: #{tpu_custom_call.1} parent=1 // pred_check
      _
    $region23: #{tpu_custom_call.1} parent=1 // pred_check_branch
      %206 = sbr.rel (0) target = $region25
    $region24: #{tpu_custom_call.1} parent=1 // pred_region
      %207 = dma.done [#allocation3], 128
    $region25: #{tpu_custom_call.1} parent=1 // pred_fallthru
      _
    // Predicated region
    $region26: #{tpu_custom_call.1} parent=1 // pred_check
      _
    $region27: #{tpu_custom_call.1} parent=1 // pred_check_branch
      %209 = sbr.rel (0) target = $region29
    $region28: #{tpu_custom_call.1} parent=1 // pred_region
      %210 = dma.done [#allocation5], 16
    $region29: #{tpu_custom_call.1} parent=1 // pred_fallthru
      _
    %211 = vsyncpa [#allocation3], 1
    %212 = vsyncpa [#allocation5], 1

</llo_original>
